<compile_context>
chip_gen: v6e
topology: v6e:2x2x1
jax: 0.10.0
libtpu: 0.0.40
codegen_flags: <defaults>
</compile_context>

<pallas_src>
import functools
import math

import jax
import jax.numpy as jnp
from jax.experimental import pallas as pl
from jax.experimental.pallas import tpu as pltpu


_TORCH_PI = 3.14159265  # the constant used by the PyTorch module


def _round_up(v: int, mult: int) -> int:
    return (v + mult - 1) // mult * mult


def _cos_m_theta(c, m):
    """Chebyshev T_m(c) == cos(m*theta) for c = cos(theta); matches SphereFace.mlambda."""
    c2 = c * c
    if m == 0:
        return jnp.ones_like(c)
    if m == 1:
        return c
    if m == 2:
        return 2.0 * c2 - 1.0
    if m == 3:
        return (4.0 * c2 - 3.0) * c
    if m == 4:
        c4 = c2 * c2
        return 8.0 * c4 - 8.0 * c2 + 1.0
    if m == 5:
        return ((16.0 * c2 - 20.0) * c2 + 5.0) * c
    raise ValueError("SphereFace supports m in 0..5")


def _k_thresholds(m):
    # k = floor(m*acos(c)/pi') == #{ j in 1..m : c <= cos(j*pi'/m) } (acos monotone
    # decreasing), so k reduces to m static threshold compares inside the kernel.
    return tuple(math.cos(j * _TORCH_PI / m) for j in range(1, m + 1))


def _epilogue(acc, xlen, inv_xlen, inv_wlen, cos_ref, phi_ref, m, thresholds):
    """Shared output-tile epilogue (runs on an f32 (TB, TC) accumulator value)."""
    cos_t = jnp.clip(acc * inv_xlen * inv_wlen, -1.0, 1.0)
    cos_m_t = _cos_m_theta(cos_t, m)

    k_int = jnp.zeros(cos_t.shape, dtype=jnp.int32)
    for t in thresholds:                       # static, <= m compares
        k_int = k_int + (cos_t <= t).astype(jnp.int32)
    # (-1)**k * cos_m_t folded into one select (no separate sign tensor).
    signed = jnp.where((k_int & 1) == 1, -cos_m_t, cos_m_t)
    phi_t = signed - 2.0 * k_int.astype(jnp.float32)

    cos_ref[...] = (cos_t * xlen).astype(cos_ref.dtype)
    phi_ref[...] = (phi_t * xlen).astype(phi_ref.dtype)


def _sphereface_kernel_single_k(x_ref, w_ref, xlen_ref, inv_xlen_ref, inv_wlen_ref,
                                cos_ref, phi_ref, *, m, thresholds):
    """2-D grid: whole reduction dim fits one K tile; no accumulator scratch."""
    acc = jnp.dot(x_ref[...], w_ref[...], preferred_element_type=jnp.float32)
    _epilogue(acc, xlen_ref[...], inv_xlen_ref[...], inv_wlen_ref[...],
              cos_ref, phi_ref, m, thresholds)


def _sphereface_kernel_multi_k(x_ref, w_ref, xlen_ref, inv_xlen_ref, inv_wlen_ref,
                               cos_ref, phi_ref, acc_ref, *, m, thresholds):
    """3-D grid with K innermost; f32 VMEM accumulator, epilogue on the last K step."""
    kk = pl.program_id(2)
    nk = pl.num_programs(2)
    partial = jnp.dot(x_ref[...], w_ref[...], preferred_element_type=jnp.float32)

    @pl.when(kk == 0)
    def _first():                     # direct write: no zero-init + read-modify-write
        acc_ref[...] = partial

    @pl.when(jnp.logical_and(kk > 0, kk < nk - 1))
    def _middle():
        acc_ref[...] += partial

    @pl.when(kk == nk - 1)
    def _finalize():                  # fold the last partial in without storing it
        _epilogue(acc_ref[...] + partial,
                  xlen_ref[...], inv_xlen_ref[...], inv_wlen_ref[...],
                  cos_ref, phi_ref, m, thresholds)


def sphereface_forward(x, weight, target=None, *, m=4, phiflag=True,
                       block_b=512, block_c=1024, block_k=512,
                       mxu_dtype=jnp.bfloat16, out_dtype=None,
                       weight_buffers=None, vmem_limit_bytes=None):
    """Pallas implementation of SphereFace.forward(input, target).

    x: (batch, in_features); weight: (in_features, out_features).
    Returns (cos_theta * xlen, phi_theta * xlen), each (batch, out_features).
    `target` is accepted for API parity but (as in the PyTorch module) unused.
    mxu_dtype: operand dtype fed to the MXU (default bf16; pass jnp.float32 for the
    exact-f32 path). out_dtype: dtype of the two outputs (default x.dtype).
    """
    if not phiflag:
        # TODO(synk): phiflag=False branch (theta=acos(cos) + myphi Taylor series) not implemented.
        raise NotImplementedError("Only phiflag=True (the default) is implemented.")
    del target

    B, D = x.shape
    D2, C = weight.shape
    assert D == D2, "weight must have shape (in_features, out_features)"

    out_dtype = x.dtype if out_dtype is None else out_dtype
    op_dtype = x.dtype if mxu_dtype is None else mxu_dtype

    # ---- norms precomputed outside the kernel, from the ORIGINAL f32 operands ----
    x32 = x.astype(jnp.float32)
    w32 = weight.astype(jnp.float32)
    xlen = jnp.sqrt(jnp.sum(x32 * x32, axis=1, keepdims=True))          # (B, 1)
    inv_xlen = 1.0 / jnp.maximum(xlen, 1e-30)
    wlen = jnp.sqrt(jnp.sum(w32 * w32, axis=0, keepdims=True))          # (1, C)
    inv_wlen = 1.0 / jnp.maximum(wlen, 1e-30)

    # ---- tiling ----
    TB = min(_round_up(block_b, 8), _round_up(B, 8))      # batch-covering when B <= block_b
    TC = min(_round_up(block_c, 128), _round_up(C, 128))
    TK = min(_round_up(block_k, 128), _round_up(D, 128))
    Bp, Cp, Dp = _round_up(B, TB), _round_up(C, TC), _round_up(D, TK)

    # v7x megacore: keep at least 2 blocks on a parallel axis (prefer classes).
    if Bp // TB == 1 and Cp // TC == 1 and TC >= 256:
        TC = _round_up(TC // 2, 128)
        Cp = _round_up(C, TC)

    multi_k = (Dp // TK) > 1

    # ---- pad / cast only when needed (padding norms with 0 keeps padded rows/cols at 0) ----
    def _prep(a, shape_p, dtype):
        pads = tuple((0, p - s) for s, p in zip(a.shape, shape_p))
        if any(hi for _, hi in pads):
            a = jnp.pad(a, pads)
        if a.dtype != dtype:
            a = a.astype(dtype)
        return a

    xp = _prep(x, (Bp, Dp), op_dtype)
    wp = _prep(weight, (Dp, Cp), op_dtype)
    xlen_p = _prep(xlen, (Bp, 1), jnp.float32)
    inv_xlen_p = _prep(inv_xlen, (Bp, 1), jnp.float32)
    inv_wlen_p = _prep(inv_wlen, (1, Cp), jnp.float32)

    # ---- VMEM budget (auto-raise the scoped limit only if the tiles demand it) ----
    op_b = jnp.dtype(op_dtype).itemsize
    out_b = jnp.dtype(out_dtype).itemsize
    est = (2 * (TB * TK + TK * TC) * op_b            # double-buffered operand tiles
           + 2 * 2 * TB * TC * out_b                 # two double-buffered output tiles
           + (TB * TC * 4 if multi_k else 0)         # f32 accumulator scratch
           + 2 * (2 * TB + TC) * 4)                  # norm side inputs
    if vmem_limit_bytes is None and est > 28 * 1024 * 1024:
        vmem_limit_bytes = min(int(est * 1.25), 60 * 1024 * 1024)

    w_kwargs = {}
    if weight_buffers is not None:                   # optional deeper pipelining on the weight
        w_kwargs["pipeline_mode"] = pl.Buffered(weight_buffers)

    if multi_k:
        grid = (Bp // TB, Cp // TC, Dp // TK)
        in_specs = [
            pl.BlockSpec((TB, TK), lambda i, j, k: (i, k)),            # x tile
            pl.BlockSpec((TK, TC), lambda i, j, k: (k, j), **w_kwargs),  # weight tile (K-major RHS)
            pl.BlockSpec((TB, 1), lambda i, j, k: (i, 0)),             # xlen
            pl.BlockSpec((TB, 1), lambda i, j, k: (i, 0)),             # 1/xlen
            pl.BlockSpec((1, TC), lambda i, j, k: (0, j)),             # 1/wlen
        ]
        out_specs = [pl.BlockSpec((TB, TC), lambda i, j, k: (i, j)),
                     pl.BlockSpec((TB, TC), lambda i, j, k: (i, j))]
        scratch_shapes = [pltpu.VMEM((TB, TC), jnp.float32)]
        dims = ("parallel", "parallel", "arbitrary")
        kernel = functools.partial(_sphereface_kernel_multi_k, m=m,
                                   thresholds=_k_thresholds(m))
    else:
        grid = (Bp // TB, Cp // TC)
        in_specs = [
            pl.BlockSpec((TB, TK), lambda i, j: (i, 0)),
            pl.BlockSpec((TK, TC), lambda i, j: (0, j), **w_kwargs),
            pl.BlockSpec((TB, 1), lambda i, j: (i, 0)),
            pl.BlockSpec((TB, 1), lambda i, j: (i, 0)),
            pl.BlockSpec((1, TC), lambda i, j: (0, j)),
        ]
        out_specs = [pl.BlockSpec((TB, TC), lambda i, j: (i, j)),
                     pl.BlockSpec((TB, TC), lambda i, j: (i, j))]
        scratch_shapes = []
        dims = ("parallel", "parallel")
        kernel = functools.partial(_sphereface_kernel_single_k, m=m,
                                   thresholds=_k_thresholds(m))

    cos_t, phi_t = pl.pallas_call(
        kernel,
        out_shape=(jax.ShapeDtypeStruct((Bp, Cp), out_dtype),
                   jax.ShapeDtypeStruct((Bp, Cp), out_dtype)),
        grid_spec=pltpu.PrefetchScalarGridSpec(
            num_scalar_prefetch=0,
            grid=grid,
            in_specs=in_specs,
            out_specs=out_specs,
            scratch_shapes=scratch_shapes,
        ),
        compiler_params=pltpu.CompilerParams(
            dimension_semantics=dims,
            vmem_limit_bytes=vmem_limit_bytes,
        ),
    )(xp, wp, xlen_p, inv_xlen_p, inv_wlen_p)

    if Bp != B or Cp != C:
        cos_t = cos_t[:B, :C]
        phi_t = phi_t[:B, :C]
    return cos_t, phi_t


# ----------------------------- reference & demo -----------------------------

def _torch_renorm_cols(w, maxnorm=1e-5):
    # torch.Tensor.renorm(p=2, dim=1, maxnorm): each column w[:, j] is rescaled so its
    # L2 norm does not exceed maxnorm (torch uses a 1e-7 eps in the divisor).
    n = jnp.sqrt(jnp.sum(w * w, axis=0, keepdims=True))
    return w * jnp.where(n > maxnorm, maxnorm / (n + 1e-7), 1.0)


def _sphereface_reference(x, weight, m):
    """Direct JAX transcription of SphereFace.forward (phiflag=True)."""
    ww = _torch_renorm_cols(weight, 1e-5) * 1e5
    xlen = jnp.sqrt(jnp.sum(x * x, axis=1))
    wlen = jnp.sqrt(jnp.sum(ww * ww, axis=0))
    cos_theta = jnp.dot(x, ww, precision=jax.lax.Precision.HIGHEST)
    cos_theta = cos_theta / xlen[:, None] / wlen[None, :]
    cos_theta = jnp.clip(cos_theta, -1.0, 1.0)
    cos_m_theta = _cos_m_theta(cos_theta, m)
    theta = jnp.arccos(cos_theta)
    k = jnp.floor(m * theta / _TORCH_PI)
    sign = jnp.where(jnp.mod(k, 2.0) == 0.0, 1.0, -1.0)   # == (-1)**k for integer k
    phi_theta = sign * cos_m_theta - 2.0 * k
    return cos_theta * xlen[:, None], phi_theta * xlen[:, None]


if __name__ == "__main__":
    in_features, out_features, batch, m = 32, 16, 8, 4

    key = jax.random.PRNGKey(0)
    kx, kw = jax.random.split(key)
    x = jax.random.normal(kx, (batch, in_features), dtype=jnp.float32)
    # Parameter init: uniform_(-1, 1).renorm_(2, 1, 1e-5).mul_(1e5)
    w_raw = jax.random.uniform(kw, (in_features, out_features), jnp.float32,
                               minval=-1.0, maxval=1.0)
    weight = _torch_renorm_cols(w_raw, 1e-5) * 1e5

    ref_cos, ref_phi = _sphereface_reference(x, weight, m)

    # Exact-f32 MXU path: tight numerical check against the reference.
    cos32, phi32 = sphereface_forward(x, weight, None, m=m, mxu_dtype=jnp.float32)
    cos32, phi32 = jax.block_until_ready((cos32, phi32))
    assert cos32.shape == (batch, out_features)
    assert phi32.shape == (batch, out_features)
    assert jnp.allclose(cos32, ref_cos, atol=2e-3, rtol=2e-3), \
        float(jnp.max(jnp.abs(cos32 - ref_cos)))
    assert jnp.allclose(phi32, ref_phi, atol=2e-3, rtol=2e-3), \
        float(jnp.max(jnp.abs(phi32 - ref_phi)))

    # Default fast path: bf16 MXU operands, f32 accumulation, f32 norms.
    cos_bf, phi_bf = sphereface_forward(x, weight, None, m=m)
    cos_bf, phi_bf = jax.block_until_ready((cos_bf, phi_bf))
    assert cos_bf.shape == (batch, out_features)
    assert phi_bf.shape == (batch, out_features)
    assert bool(jnp.all(jnp.isfinite(cos_bf))) and bool(jnp.all(jnp.isfinite(phi_bf)))
    assert jnp.allclose(cos_bf, ref_cos, atol=5e-2, rtol=5e-2), \
        float(jnp.max(jnp.abs(cos_bf - ref_cos)))
    # (phi under bf16 operands can legitimately jump near the k-thresholds, so it is
    #  only finiteness-checked here; the f32 path above validates the phi formula.)

    print("KERNEL_OK")
</pallas_src>

<mosaic_0001>
module attributes {stable_mosaic.version = 11 : i64} {
  func.func @_sphereface_kernel_single_k(%arg0: i32, %arg1: i32, %arg2: memref<8x128xf32, #tpu.memory_space<vmem>>, %arg3: memref<128x128xf32, #tpu.memory_space<vmem>>, %arg4: memref<8x1xf32, #tpu.memory_space<vmem>>, %arg5: memref<8x1xf32, #tpu.memory_space<vmem>>, %arg6: memref<1x128xf32, #tpu.memory_space<vmem>>, %arg7: memref<8x128xf32, #tpu.memory_space<vmem>>, %arg8: memref<8x128xf32, #tpu.memory_space<vmem>>) attributes {dimension_semantics = [#tpu.dimension_semantics<parallel>, #tpu.dimension_semantics<parallel>], iteration_bounds = array<i64: 1, 1>, scalar_prefetch = 0 : i64, scratch_operands = 0 : i64, tpu.core_type = #tpu.core_type<tc>, window_params = [{transform_indices = @transform_0, window_bounds = array<i64: 8, 128>}, {transform_indices = @transform_1, window_bounds = array<i64: 128, 128>}, {transform_indices = @transform_2, window_bounds = array<i64: 8, 1>}, {transform_indices = @transform_3, window_bounds = array<i64: 8, 1>}, {transform_indices = @transform_4, window_bounds = array<i64: 1, 128>}, {transform_indices = @transform_5, window_bounds = array<i64: 8, 128>}, {transform_indices = @transform_6, window_bounds = array<i64: 8, 128>}]} {
    %c0 = arith.constant 0 : index
    %c0_0 = arith.constant 0 : index
    %0 = vector.load %arg2[%c0, %c0_0] : memref<8x128xf32, #tpu.memory_space<vmem>>, vector<8x128xf32>
    %c0_1 = arith.constant 0 : index
    %c0_2 = arith.constant 0 : index
    %1 = vector.load %arg3[%c0_1, %c0_2] : memref<128x128xf32, #tpu.memory_space<vmem>>, vector<128x128xf32>
    %cst = arith.constant dense<0.000000e+00> : vector<8x128xf32>
    %2 = tpu.matmul %0, %1, %cst {dimension_numbers = #tpu.dot_dimension_numbers<[1], [0], [0], [1], [0, 0, 1, 1], [], []>} : vector<8x128xf32>, vector<128x128xf32>, vector<8x128xf32> -> vector<8x128xf32>
    %c0_3 = arith.constant 0 : index
    %c0_4 = arith.constant 0 : index
    %3 = vector.load %arg4[%c0_3, %c0_4] : memref<8x1xf32, #tpu.memory_space<vmem>>, vector<8x1xf32>
    %c0_5 = arith.constant 0 : index
    %c0_6 = arith.constant 0 : index
    %4 = vector.load %arg5[%c0_5, %c0_6] : memref<8x1xf32, #tpu.memory_space<vmem>>, vector<8x1xf32>
    %c0_7 = arith.constant 0 : index
    %c0_8 = arith.constant 0 : index
    %5 = vector.load %arg6[%c0_7, %c0_8] : memref<1x128xf32, #tpu.memory_space<vmem>>, vector<1x128xf32>
    %6 = vector.broadcast %4 : vector<8x1xf32> to vector<8x128xf32>
    %7 = arith.mulf %2, %6 : vector<8x128xf32>
    %8 = vector.broadcast %5 : vector<1x128xf32> to vector<8x128xf32>
    %9 = arith.mulf %7, %8 : vector<8x128xf32>
    %cst_9 = arith.constant -1.000000e+00 : f32
    %cst_10 = arith.constant 1.000000e+00 : f32
    %10 = vector.broadcast %cst_9 : f32 to vector<8x128xf32>
    %11 = arith.maximumf %10, %9 : vector<8x128xf32>
    %12 = vector.broadcast %cst_10 : f32 to vector<8x128xf32>
    %13 = arith.minimumf %12, %11 : vector<8x128xf32>
    %14 = arith.mulf %13, %13 : vector<8x128xf32>
    %15 = arith.mulf %14, %14 : vector<8x128xf32>
    %cst_11 = arith.constant 8.000000e+00 : f32
    %16 = vector.broadcast %cst_11 : f32 to vector<8x128xf32>
    %17 = arith.mulf %16, %15 : vector<8x128xf32>
    %cst_12 = arith.constant 8.000000e+00 : f32
    %18 = vector.broadcast %cst_12 : f32 to vector<8x128xf32>
    %19 = arith.mulf %18, %14 : vector<8x128xf32>
    %20 = arith.subf %17, %19 : vector<8x128xf32>
    %cst_13 = arith.constant 1.000000e+00 : f32
    %21 = vector.broadcast %cst_13 : f32 to vector<8x128xf32>
    %22 = arith.addf %20, %21 : vector<8x128xf32>
    %c0_i32 = arith.constant 0 : i32
    %23 = vector.broadcast %c0_i32 : i32 to vector<8x128xi32>
    %cst_14 = arith.constant 0.707106769 : f32
    %24 = vector.broadcast %cst_14 : f32 to vector<8x128xf32>
    %25 = arith.cmpf ole, %13, %24 : vector<8x128xf32>
    %26 = arith.extui %25 : vector<8x128xi1> to vector<8x128xi32>
    %27 = arith.addi %23, %26 : vector<8x128xi32>
    %cst_15 = arith.constant 1.79489656E-9 : f32
    %28 = vector.broadcast %cst_15 : f32 to vector<8x128xf32>
    %29 = arith.cmpf ole, %13, %28 : vector<8x128xf32>
    %30 = arith.extui %29 : vector<8x128xi1> to vector<8x128xi32>
    %31 = arith.addi %27, %30 : vector<8x128xi32>
    %cst_16 = arith.constant -0.707106769 : f32
    %32 = vector.broadcast %cst_16 : f32 to vector<8x128xf32>
    %33 = arith.cmpf ole, %13, %32 : vector<8x128xf32>
    %34 = arith.extui %33 : vector<8x128xi1> to vector<8x128xi32>
    %35 = arith.addi %31, %34 : vector<8x128xi32>
    %cst_17 = arith.constant -1.000000e+00 : f32
    %36 = vector.broadcast %cst_17 : f32 to vector<8x128xf32>
    %37 = arith.cmpf ole, %13, %36 : vector<8x128xf32>
    %38 = arith.extui %37 : vector<8x128xi1> to vector<8x128xi32>
    %39 = arith.addi %35, %38 : vector<8x128xi32>
    %c1_i32 = arith.constant 1 : i32
    %40 = vector.broadcast %c1_i32 : i32 to vector<8x128xi32>
    %41 = arith.andi %39, %40 : vector<8x128xi32>
    %c1_i32_18 = arith.constant 1 : i32
    %42 = vector.broadcast %c1_i32_18 : i32 to vector<8x128xi32>
    %43 = arith.cmpi eq, %41, %42 : vector<8x128xi32>
    %cst_19 = arith.constant 0.000000e+00 : f32
    %44 = vector.broadcast %cst_19 : f32 to vector<8x128xf32>
    %45 = arith.subf %44, %22 : vector<8x128xf32>
    %46 = arith.select %43, %45, %22 : vector<8x128xi1>, vector<8x128xf32>
    %47 = arith.sitofp %39 : vector<8x128xi32> to vector<8x128xf32>
    %cst_20 = arith.constant 2.000000e+00 : f32
    %48 = vector.broadcast %cst_20 : f32 to vector<8x128xf32>
    %49 = arith.mulf %48, %47 : vector<8x128xf32>
    %50 = arith.subf %46, %49 : vector<8x128xf32>
    %51 = vector.broadcast %3 : vector<8x1xf32> to vector<8x128xf32>
    %52 = arith.mulf %13, %51 : vector<8x128xf32>
    %c0_21 = arith.constant 0 : index
    %c0_22 = arith.constant 0 : index
    %53 = vector.load %arg7[%c0_21, %c0_22] : memref<8x128xf32, #tpu.memory_space<vmem>>, vector<8x128xf32>
    tpu.vector_store %arg7[%c0_21, %c0_22], %52 {strides = array<i32>} : memref<8x128xf32, #tpu.memory_space<vmem>>, vector<8x128xf32>,
    %54 = vector.broadcast %3 : vector<8x1xf32> to vector<8x128xf32>
    %55 = arith.mulf %50, %54 : vector<8x128xf32>
    %c0_23 = arith.constant 0 : index
    %c0_24 = arith.constant 0 : index
    %56 = vector.load %arg8[%c0_23, %c0_24] : memref<8x128xf32, #tpu.memory_space<vmem>>, vector<8x128xf32>
    tpu.vector_store %arg8[%c0_23, %c0_24], %55 {strides = array<i32>} : memref<8x128xf32, #tpu.memory_space<vmem>>, vector<8x128xf32>,
    return
  }
  func.func @transform_0(%arg0: i32, %arg1: i32) -> (i32, i32) {
    %c0_i32 = arith.constant 0 : i32
    %c0_i32_0 = arith.constant 0 : i32
    return %arg0, %c0_i32 : i32, i32
  }
  func.func @transform_1(%arg0: i32, %arg1: i32) -> (i32, i32) {
    %c0_i32 = arith.constant 0 : i32
    %c0_i32_0 = arith.constant 0 : i32
    return %c0_i32, %arg1 : i32, i32
  }
  func.func @transform_2(%arg0: i32, %arg1: i32) -> (i32, i32) {
    %c0_i32 = arith.constant 0 : i32
    %c0_i32_0 = arith.constant 0 : i32
    return %arg0, %c0_i32 : i32, i32
  }
  func.func @transform_3(%arg0: i32, %arg1: i32) -> (i32, i32) {
    %c0_i32 = arith.constant 0 : i32
    %c0_i32_0 = arith.constant 0 : i32
    return %arg0, %c0_i32 : i32, i32
  }
  func.func @transform_4(%arg0: i32, %arg1: i32) -> (i32, i32) {
    %c0_i32 = arith.constant 0 : i32
    %c0_i32_0 = arith.constant 0 : i32
    return %c0_i32, %arg1 : i32, i32
  }
  func.func @transform_5(%arg0: i32, %arg1: i32) -> (i32, i32) {
    %c0_i32 = arith.constant 0 : i32
    return %arg0, %arg1 : i32, i32
  }
  func.func @transform_6(%arg0: i32, %arg1: i32) -> (i32, i32) {
    %c0_i32 = arith.constant 0 : i32
    return %arg0, %arg1 : i32, i32
  }
}

</mosaic_0001>

<llo_original>
// kernel: tpu_custom_call.1
$region0: #{tpu_custom_call.1}
  #allocation0 [shape = 'u32[]', space=smem, size = 0x4, offset = 0x4, fixed_abs, tag = 'smem constant byte address 0x4 - core index']
  #allocation1 [shape = 'u32[144,128]{1,0:T(1,128)}', space=vmem, size = 0x12000, scoped, tag = 'internal scratch']
  %s0 = inlined_call_operand.vmem [shape: f32[8,128], index: 0, kind: input, shape index: {}]
  %s1 = inlined_call_operand.hbm [shape: f32[128,128], index: 1, kind: input, shape index: {}]
  %s2 = inlined_call_operand.vmem [shape: f32[8,1], index: 2, kind: input, shape index: {}]
  %s3 = inlined_call_operand.vmem [shape: f32[8,1], index: 3, kind: input, shape index: {}]
  %s4 = inlined_call_operand.vmem [shape: f32[1,128], index: 4, kind: input, shape index: {}]
  %s5 = inlined_call_operand.hbm [shape: f32[8,128], index: 5, kind: output, shape index: {0}]
  %s6 = inlined_call_operand.hbm [shape: f32[8,128], index: 6, kind: output, shape index: {1}]
  %7 = xla_tuple %s5, %s6
  %s8 = sld [smem:[#allocation0]]
  $region42: #{tpu_custom_call.1} parent=0
    _
  %s10 = ssub.s32 1, %s8
  %s11 = scalar_select 0, %s10, %s8
  $region1: #{tpu_custom_call.1} parent=0
    #allocation2 [shape = 'u8[65536]{0}', space=vmem, size = 0x10000, scoped, tag = 'input window, operand 1, single buffered']
    #allocation3 [shape = 's32[1]{0}', space=sflag, size = 0x4, scoped, tag = 'scoped memory for tpu_custom_call.1']
    #allocation4 [shape = 's32[1]{0}', space=sflag, size = 0x4, scoped, tag = 'scoped memory for tpu_custom_call.1']
    #allocation5 [shape = 'u8[4096]{0}', space=vmem, size = 0x1000, scoped, tag = 'output window, operand 0, single buffered']
    #allocation6 [shape = 'u8[4096]{0}', space=vmem, size = 0x1000, scoped, tag = 'output window, operand 1, single buffered']
    #allocation7 [shape = 's32[1]{0}', space=sflag, size = 0x4, scoped, tag = 'scoped memory for tpu_custom_call.1']
    %12 = vsyncpa [#allocation3], 0
    %13 = vsyncpa [#allocation4], 0
    %14 = vsyncpa [#allocation7], 0
    // Predicated region
    $region2: #{tpu_custom_call.1} parent=1 // pred_check
      _
    $region3: #{tpu_custom_call.1} parent=1 // pred_check_branch
      %16 = sbr.rel (0) target = $region5
    $region4: #{tpu_custom_call.1} parent=1 // pred_region
      _
    $region5: #{tpu_custom_call.1} parent=1 // pred_fallthru
      _
    // Predicated region
    $region6: #{tpu_custom_call.1} parent=1 // pred_check
      _
    $region7: #{tpu_custom_call.1} parent=1 // pred_check_branch
      %18 = sbr.rel (0) target = $region9
    $region8: #{tpu_custom_call.1} parent=1 // pred_region
      %s20 = ssub.s32 2048, 2048
      %21 = vsyncadd [#allocation3], %s20
      %s22 = sshll.u32 [#allocation2], 4
      %s23 = int_to_ptr.vmem [resolvable:$true] %s22
      %28 = dma.hbm_to_vmem [thread:$0]  %s1, 2048, %s23, [#allocation3], 128, 128, 8
    $region9: #{tpu_custom_call.1} parent=1 // pred_fallthru
      _
    // Predicated region
    $region10: #{tpu_custom_call.1} parent=1 // pred_check
      _
    $region11: #{tpu_custom_call.1} parent=1 // pred_check_branch
      %30 = sbr.rel (0) target = $region13
    $region12: #{tpu_custom_call.1} parent=1 // pred_region
      _
    $region13: #{tpu_custom_call.1} parent=1 // pred_fallthru
      _
    // Predicated region
    $region14: #{tpu_custom_call.1} parent=1 // pred_check
      _
    $region15: #{tpu_custom_call.1} parent=1 // pred_check_branch
      %32 = sbr.rel (0) target = $region17
    $region16: #{tpu_custom_call.1} parent=1 // pred_region
      _
    $region17: #{tpu_custom_call.1} parent=1 // pred_fallthru
      _
    // Predicated region
    $region18: #{tpu_custom_call.1} parent=1 // pred_check
      _
    $region19: #{tpu_custom_call.1} parent=1 // pred_check_branch
      %34 = sbr.rel (0) target = $region21
    $region20: #{tpu_custom_call.1} parent=1 // pred_region
      _
    $region21: #{tpu_custom_call.1} parent=1 // pred_fallthru
      _
    // Predicated region
    $region22: #{tpu_custom_call.1} parent=1 // pred_check
      _
    $region23: #{tpu_custom_call.1} parent=1 // pred_check_branch
      %36 = sbr.rel (0) target = $region25
    $region24: #{tpu_custom_call.1} parent=1 // pred_region
      %37 = dma.done [#allocation3], 2048
    $region25: #{tpu_custom_call.1} parent=1 // pred_fallthru
      _
    %v38 = vld [vmem:[%s0] sm:$0xff]
    %v39 = vld [vmem:[#allocation2] sm:$0xff]
    %v40 = vld [vmem:[#allocation2 + $0x8] sm:$0xff]
    %v41 = vld [vmem:[#allocation2 + $0x10] sm:$0xff]
    %v42 = vld [vmem:[#allocation2 + $0x18] sm:$0xff]
    %v43 = vld [vmem:[#allocation2 + $0x20] sm:$0xff]
    %v44 = vld [vmem:[#allocation2 + $0x28] sm:$0xff]
    %v45 = vld [vmem:[#allocation2 + $0x30] sm:$0xff]
    %v46 = vld [vmem:[#allocation2 + $0x38] sm:$0xff]
    %v47 = vld [vmem:[#allocation2 + $0x40] sm:$0xff]
    %v48 = vld [vmem:[#allocation2 + $0x48] sm:$0xff]
    %v49 = vld [vmem:[#allocation2 + $0x50] sm:$0xff]
    %v50 = vld [vmem:[#allocation2 + $0x58] sm:$0xff]
    %v51 = vld [vmem:[#allocation2 + $0x60] sm:$0xff]
    %v52 = vld [vmem:[#allocation2 + $0x68] sm:$0xff]
    %v53 = vld [vmem:[#allocation2 + $0x70] sm:$0xff]
    %v54 = vld [vmem:[#allocation2 + $0x78] sm:$0xff]
    %55 = vmatprep.subr.mxu0 0.0
    %56 = vmatpush1.msra.mxu0 %v54
    %57 = vmatprep.subr.mxu0 0.0
    %58 = vmatpush1.msra.mxu0 %v53
    %59 = vmatprep.subr.mxu0 0.0
    %60 = vmatpush1.msra.mxu0 %v52
    %61 = vmatprep.subr.mxu0 0.0
    %62 = vmatpush1.msra.mxu0 %v51
    %63 = vmatprep.subr.mxu0 0.0
    %64 = vmatpush1.msra.mxu0 %v50
    %65 = vmatprep.subr.mxu0 0.0
    %66 = vmatpush1.msra.mxu0 %v49
    %67 = vmatprep.subr.mxu0 0.0
    %68 = vmatpush1.msra.mxu0 %v48
    %69 = vmatprep.subr.mxu0 0.0
    %70 = vmatpush1.msra.mxu0 %v47
    %71 = vmatprep.subr.mxu0 0.0
    %72 = vmatpush1.msra.mxu0 %v46
    %73 = vmatprep.subr.mxu0 0.0
    %74 = vmatpush1.msra.mxu0 %v45
    %75 = vmatprep.subr.mxu0 0.0
    %76 = vmatpush1.msra.mxu0 %v44
    %77 = vmatprep.subr.mxu0 0.0
    %78 = vmatpush1.msra.mxu0 %v43
    %79 = vmatprep.subr.mxu0 0.0
    %80 = vmatpush1.msra.mxu0 %v42
    %81 = vmatprep.subr.mxu0 0.0
    %82 = vmatpush1.msra.mxu0 %v41
    %83 = vmatprep.subr.mxu0 0.0
    %84 = vmatpush1.msra.mxu0 %v40
    %85 = vmatprep.subr.mxu0 0.0
    %86 = vmatpush1.msra.mxu0 %v39
    %87 = vmatprep.subr.mxu0 0.0
    %88 = vmatpush2.msra.mxu0 0.0
    %89 = vmatprep.subr.mxu0 0.0
    %90 = vmatpush2.msra.mxu0 0.0
    %91 = vmatprep.subr.mxu0 0.0
    %92 = vmatpush2.msra.mxu0 0.0
    %93 = vmatprep.subr.mxu0 0.0
    %94 = vmatpush2.msra.mxu0 0.0
    %95 = vmatprep.subr.mxu0 0.0
    %96 = vmatpush2.msra.mxu0 0.0
    %97 = vmatprep.subr.mxu0 0.0
    %98 = vmatpush2.msra.mxu0 0.0
    %99 = vmatprep.subr.mxu0 0.0
    %100 = vmatpush2.msra.mxu0 0.0
    %101 = vmatprep.subr.mxu0 0.0
    %102 = vmatpush2.msra.mxu0 0.0
    %103 = vmatprep.subr.mxu0 0.0
    %104 = vmatpush2.msra.mxu0 0.0
    %105 = vmatprep.subr.mxu0 0.0
    %106 = vmatpush2.msra.mxu0 0.0
    %107 = vmatprep.subr.mxu0 0.0
    %108 = vmatpush2.msra.mxu0 0.0
    %109 = vmatprep.subr.mxu0 0.0
    %110 = vmatpush2.msra.mxu0 0.0
    %111 = vmatprep.subr.mxu0 0.0
    %112 = vmatpush2.msra.mxu0 0.0
    %113 = vmatprep.subr.mxu0 0.0
    %114 = vmatpush2.msra.mxu0 0.0
    %115 = vmatprep.subr.mxu0 0.0
    %116 = vmatpush2.msra.mxu0 0.0
    %117 = vmatprep.subr.mxu0 0.0
    %118 = vmatpush2.msra.mxu0 0.0
    %119 = vmatprep.mubr.f32.mxu0 0.0
    %120 = vmatmul.mubr.f32.gmra.mxu0 %v38
    %v121 = vpop.f32.mrf.mxu0
    %v122 = vadd.f32 0.0, %v121
    %v123 = vpop.f32.mrf.mxu0
    %124 = vdwg.mxu0
    %v125 = vld [vmem:[%s2] sm:$0xff]
    %v126 = vld [vmem:[%s3] sm:$0xff]
    %v127 = vld [vmem:[%s4] sm:$0x1]
    %129 = vset.pattern.permute.xlu0 0
    %130 = vperm.xlu0 %129, %v126
    %v131 = vpop.permute.xlu0 %130
    %v133 = vmul.f32 %v122, %v131
    %v135 = vlaneseq
    %v136 = vshrl.u32 %v135, 7
    %v137 = vsub.s32 0, %v136
    %v138 = vrot.slane %v127, %v137
    %v140 = vmul.f32 %v133, %v138
    %v141 = vmax.f32 %v140, -1.0
    %v142 = vmin.f32 %v141, 1.0
    %v143 = vmul.f32 %v142, %v142
    %v144 = vmul.f32 %v143, %v143
    %v145 = vmul.f32 %v144, 8.0
    %v146 = vmul.f32 %v143, 8.0
    %v147 = vsub.f32 %v145, %v146
    %v148 = vadd.f32 %v147, 1.0
    %vm149 = vcmp.le.f32.partialorder %v142, 0.70710677
    %v150 = vsel %vm149, 1, 0
    %vm151 = vcmp.le.f32.partialorder %v142, 1.7948966e-09
    %v152 = vsel %vm151, 1, 0
    %v153 = vadd.s32 %v150, %v152
    %vm154 = vcmp.le.f32.partialorder %v142, -0.70710677
    %v155 = vsel %vm154, 1, 0
    %v156 = vadd.s32 %v153, %v155
    %vm157 = vcmp.le.f32.partialorder %v142, -1.0
    %v158 = vsel %vm157, 1, 0
    %v159 = vadd.s32 %v156, %v158
    %v160 = vand.u32 %v159, 1
    %vm161 = vcmp.eq.s32.totalorder %v160, 1
    %v162 = vsub.f32 0.0, %v148
    %v163 = vsel %vm161, %v162, %v148
    %v164 = vcvt.s32.f32 %v159
    %v165 = vmul.f32 %v164, 2.0
    %v166 = vsub.f32 %v163, %v165
    %168 = vset.pattern.permute.xlu0 0
    %169 = vperm.xlu0 %168, %v125
    %v170 = vpop.permute.xlu0 %169
    %v172 = vmul.f32 %v142, %v170
    %173 = vst [vmem:[#allocation5] sm:$0xff] %v172
    %v174 = vmul.f32 %v166, %v170
    %175 = vst [vmem:[#allocation6] sm:$0xff] %v174
    // Predicated region
    $region26: #{tpu_custom_call.1} parent=1 // pred_check
      _
    $region27: #{tpu_custom_call.1} parent=1 // pred_check_branch
      %177 = sbr.rel (0) target = $region29
    $region28: #{tpu_custom_call.1} parent=1 // pred_region
      %s179 = ssub.s32 128, 128
      %180 = vsyncadd [#allocation4], %s179
      %s182 = sshll.u32 [#allocation5], 4
      %s183 = int_to_ptr.vmem [resolvable:$true] %s182
      %185 = dma.vmem_to_hbm [thread:$0]  %s183, 128, %s5, [#allocation4]
    $region29: #{tpu_custom_call.1} parent=1 // pred_fallthru
      _
    // Predicated region
    $region30: #{tpu_custom_call.1} parent=1 // pred_check
      _
    $region31: #{tpu_custom_call.1} parent=1 // pred_check_branch
      %187 = sbr.rel (0) target = $region33
    $region32: #{tpu_custom_call.1} parent=1 // pred_region
      %s189 = ssub.s32 128, 128
      %190 = vsyncadd [#allocation7], %s189
      %s192 = sshll.u32 [#allocation6], 4
      %s193 = int_to_ptr.vmem [resolvable:$true] %s192
      %195 = dma.vmem_to_hbm [thread:$0]  %s193, 128, %s6, [#allocation7]
    $region33: #{tpu_custom_call.1} parent=1 // pred_fallthru
      _
    // Predicated region
    $region34: #{tpu_custom_call.1} parent=1 // pred_check
      _
    $region35: #{tpu_custom_call.1} parent=1 // pred_check_branch
      %197 = sbr.rel (0) target = $region37
    $region36: #{tpu_custom_call.1} parent=1 // pred_region
      %198 = dma.done [#allocation4], 128
    $region37: #{tpu_custom_call.1} parent=1 // pred_fallthru
      _
    // Predicated region
    $region38: #{tpu_custom_call.1} parent=1 // pred_check
      _
    $region39: #{tpu_custom_call.1} parent=1 // pred_check_branch
      %200 = sbr.rel (0) target = $region41
    $region40: #{tpu_custom_call.1} parent=1 // pred_region
      %201 = dma.done [#allocation7], 128
    $region41: #{tpu_custom_call.1} parent=1 // pred_fallthru
      _
    %202 = vsyncpa [#allocation3], 1
    %203 = vsyncpa [#allocation4], 1
    %204 = vsyncpa [#allocation7], 1

</llo_original>
